<compile_context>
chip_gen: v7x
topology: tpu7x:2x2x1
jax: 0.10.0
libtpu: 0.0.40
codegen_flags: <defaults>
</compile_context>

<pallas_src>
import functools
import numpy as np
import jax
import jax.numpy as jnp
from jax.experimental import pallas as pl
from jax.experimental.pallas import tpu as pltpu

K_KERNELS = 10      # GMMConv n_kernels
P_DIM = 2           # pseudo-coordinate dimension
C_PAD = 128         # lane-dense channel padding for activations / weights / bias
SRC_CHUNK = 128     # per-grid-step source chunk in graph_max (lane-aligned mask block)
VMEM_LIMIT = 40 * 1024 * 1024   # leave headroom under v7x's 64 MiB physical VMEM


def round_up(x, m):
    return ((x + m - 1) // m) * m


def pick_dst_tile(n_pad, cap=256):
    """Largest tile <= cap (multiple of 8) dividing n_pad that leaves >= 2 grid
    steps (keeps both v7x TensorCores busy); falls back to the full extent."""
    start = (min(cap, n_pad // 2) // 8) * 8
    for tm in range(start, 7, -8):
        if n_pad % tm == 0:
            return tm
    return n_pad


# ---------------------------------------------------------------------------
# Gaussian kernel weights per edge -- plain XLA (KB-scale op feeding an XLA
# scatter; a dedicated pallas_call would be pure launch overhead + an extra HBM
# round trip).
# ---------------------------------------------------------------------------
def gaussian_edge_weights(pseudo, mu, inv_sigma):
    """pseudo (E,2), mu (K,2), inv_sigma (K,2) -> (K, E) f32."""
    d = (pseudo[None, :, :] - mu[:, None, :]) * inv_sigma[:, None, :]
    return jnp.exp(-0.5 * jnp.sum(d * d, axis=-1)).astype(jnp.float32)


# ---------------------------------------------------------------------------
# Dense mean-aggregation slabs A (K, Ndst_pad, Nsrc_pad) bf16, built directly in
# the per-k slab layout with 1/deg folded into the edge weights pre-scatter.
# ---------------------------------------------------------------------------
def build_dense_A(src, dst, w_ke, n_dst, n_src):
    K = w_ke.shape[0]
    n_dst_pad = round_up(n_dst, 8)
    n_src_pad = round_up(n_src, C_PAD)
    deg = jnp.zeros((n_dst,), jnp.float32).at[dst].add(1.0)
    inv_deg = 1.0 / jnp.maximum(deg, 1.0)
    vals = w_ke * inv_deg[dst][None, :]                               # (K, E)
    A = jnp.zeros((K, n_dst_pad, n_src_pad), jnp.float32).at[:, dst, src].add(vals)
    return A.astype(jnp.bfloat16)


def place_weight(W, cin_segments, cin_pad, cout_pad):
    """W (K, Cin, Cout) -> (K, cin_pad, cout_pad); rows placed at padded offsets so
    zero-padded / concat-padded activation channels multiply zero weights."""
    K, _, c_out = W.shape
    Wp = jnp.zeros((K, cin_pad, cout_pad), jnp.float32)
    s = 0
    for off, width in cin_segments:
        Wp = Wp.at[:, off:off + width, :c_out].set(W[:, s:s + width, :].astype(jnp.float32))
        s += width
    return Wp


def pad_bias(b, cout_pad):
    return jnp.zeros((1, cout_pad), jnp.float32).at[0, :b.shape[0]].set(b.astype(jnp.float32))


def pad_channels(h, c_pad):
    n, c = h.shape
    return jnp.zeros((n, c_pad), jnp.float32).at[:, :c].set(h.astype(jnp.float32))


# ---------------------------------------------------------------------------
# Pallas kernel 1: hoisted wide projection  HW_k = H @ W_k  (grid over K).
# bf16 x bf16 on the MXU, f32 accumulate, bf16 lane-dense (128-wide) stores.
# ---------------------------------------------------------------------------
def _proj_kernel(h_ref, w_ref, hw_ref):
    hw_ref[...] = jnp.dot(h_ref[...], w_ref[...],
                          preferred_element_type=jnp.float32).astype(hw_ref.dtype)


# ---------------------------------------------------------------------------
# Pallas kernel 2: aggregation  out = act( sum_k A_k @ HW_k (+ bias) ).
# K accumulating bf16 matmuls straight off the refs (per-k slices are lane
# aligned: n_src_pad and C_PAD are multiples of 128) -- no restack, no scratch.
# ---------------------------------------------------------------------------
def _agg_kernel(a_ref, hw_ref, b_ref, o_ref, *, k_kernels, c_out_pad,
                activation, add_bias):
    acc = jnp.dot(a_ref[0], hw_ref[:, 0:c_out_pad],
                  preferred_element_type=jnp.float32)
    for k in range(1, k_kernels):
        acc += jnp.dot(a_ref[k], hw_ref[:, k * c_out_pad:(k + 1) * c_out_pad],
                       preferred_element_type=jnp.float32)
    if add_bias:
        acc = acc + b_ref[...]
    if activation == "relu":
        acc = jnp.maximum(acc, 0.0)
    elif activation == "tanh":
        acc = jnp.tanh(acc)
    o_ref[...] = acc


def gmm_conv(h, w_pad, A, bias_pad, activation, add_bias):
    """h (n_src, c_in_pad) f32, w_pad (K, c_in_pad, C_PAD) f32,
    A (K, n_dst_pad, n_src_pad) bf16, bias_pad (1, C_PAD) f32
    -> (n_dst_pad, C_PAD) f32 (padded cols stay 0)."""
    K, c_in_pad, c_out_pad = w_pad.shape
    n_dst_pad, n_src_pad = A.shape[1], A.shape[2]
    n_src = h.shape[0]

    # bf16 operands for the fast MXU path; wide weight laid out (c_in, K*C_PAD).
    w_flat = jnp.transpose(w_pad, (1, 0, 2)).reshape(c_in_pad, K * c_out_pad)
    w_flat = w_flat.astype(jnp.bfloat16)
    hp = jnp.zeros((n_src_pad, c_in_pad), jnp.bfloat16).at[:n_src, :].set(
        h.astype(jnp.bfloat16))

    # (1) hoisted projection, grid over the K kernels ('parallel').
    hw = pl.pallas_call(
        _proj_kernel,
        out_shape=jax.ShapeDtypeStruct((n_src_pad, K * c_out_pad), jnp.bfloat16),
        grid_spec=pltpu.PrefetchScalarGridSpec(
            num_scalar_prefetch=0,
            grid=(K,),
            in_specs=[pl.BlockSpec((n_src_pad, c_in_pad), lambda k: (0, 0)),
                      pl.BlockSpec((c_in_pad, c_out_pad), lambda k: (0, k))],
            out_specs=pl.BlockSpec((n_src_pad, c_out_pad), lambda k: (0, k))),
        compiler_params=pltpu.CompilerParams(
            dimension_semantics=("parallel",),
            vmem_limit_bytes=VMEM_LIMIT),
    )(hp, w_flat)

    # (2) aggregation matmuls, grid over dst tiles ('parallel', >= 2 steps).
    tm = pick_dst_tile(n_dst_pad)
    kernel = functools.partial(_agg_kernel, k_kernels=K, c_out_pad=c_out_pad,
                               activation=activation, add_bias=add_bias)
    # TODO(synk): add a contraction-axis grid (pl.when init/finalize) once
    # (K, tm, n_src_pad) no longer fits one VMEM block.
    return pl.pallas_call(
        kernel,
        out_shape=jax.ShapeDtypeStruct((n_dst_pad, c_out_pad), jnp.float32),
        grid_spec=pltpu.PrefetchScalarGridSpec(
            num_scalar_prefetch=0,
            grid=(n_dst_pad // tm,),
            in_specs=[pl.BlockSpec((K, tm, n_src_pad), lambda i: (0, i, 0)),
                      pl.BlockSpec((n_src_pad, K * c_out_pad), lambda i: (0, 0)),
                      pl.BlockSpec((1, c_out_pad), lambda i: (0, 0))],
            out_specs=pl.BlockSpec((tm, c_out_pad), lambda i: (i, 0))),
        compiler_params=pltpu.CompilerParams(
            dimension_semantics=("parallel",),
            vmem_limit_bytes=VMEM_LIMIT),
    )(A, hw, bias_pad)


# ---------------------------------------------------------------------------
# Pallas kernel 3: graph max-aggregation (copy_u + max reduce).
# Running max accumulated directly in the resident output block across the
# 'arbitrary' source-chunk axis; 2-D per-source-row where/max (VALU-only, ~16
# live vregs, no 3-D blob / XLU reduce); int8 mask compared != 0.
# Every real dst node has >= 1 in-edge (self loops), so -1e30 never survives.
# ---------------------------------------------------------------------------
def _maxagg_kernel(h_ref, m_ref, o_ref, *, src_chunk):
    s = pl.program_id(1)

    @pl.when(s == 0)
    def _():
        o_ref[...] = jnp.full(o_ref.shape, -1e30, dtype=o_ref.dtype)

    h = h_ref[...]                 # (src_chunk, C_PAD) f32
    m = m_ref[...]                 # (tm, src_chunk) int8
    acc = o_ref[...]
    for j in range(src_chunk):     # static unroll; (tm,1) mask col vs (1,C) h row
        acc = jnp.maximum(
            acc, jnp.where(m[:, j:j + 1] != 0, h[j:j + 1, :], jnp.float32(-1e30)))
    o_ref[...] = acc


def graph_max(h, mask_i8):
    """h (n_src, C_PAD) f32, mask (n_dst, n_src) int8 -> (n_dst, C_PAD) f32."""
    n_dst, n_src = mask_i8.shape
    c_pad = h.shape[1]
    n_src_pad = round_up(n_src, SRC_CHUNK)
    n_dst_pad = round_up(n_dst, 8)
    hp = jnp.zeros((n_src_pad, c_pad), jnp.float32).at[:n_src, :].set(
        h.astype(jnp.float32))
    mp = jnp.zeros((n_dst_pad, n_src_pad), jnp.int8).at[:n_dst, :n_src].set(
        mask_i8.astype(jnp.int8))

    tm = pick_dst_tile(n_dst_pad)
    out = pl.pallas_call(
        functools.partial(_maxagg_kernel, src_chunk=SRC_CHUNK),
        out_shape=jax.ShapeDtypeStruct((n_dst_pad, c_pad), jnp.float32),
        grid_spec=pltpu.PrefetchScalarGridSpec(
            num_scalar_prefetch=0,
            grid=(n_dst_pad // tm, n_src_pad // SRC_CHUNK),
            in_specs=[pl.BlockSpec((SRC_CHUNK, c_pad), lambda i, s: (s, 0)),
                      pl.BlockSpec((tm, SRC_CHUNK), lambda i, s: (i, s))],
            out_specs=pl.BlockSpec((tm, c_pad), lambda i, s: (i, 0))),
        compiler_params=pltpu.CompilerParams(
            dimension_semantics=("parallel", "arbitrary"),
            vmem_limit_bytes=VMEM_LIMIT),
    )(hp, mp)
    return out[:n_dst]


# ---------------------------------------------------------------------------
# Synthetic graph construction (deterministic; replaces UNet.initialize()).
# ---------------------------------------------------------------------------
def ring_graph_edges(n):
    i = np.arange(n)
    src = np.concatenate([i, (i + 1) % n, (i - 1) % n]).astype(np.int32)
    dst = np.concatenate([i, i, i]).astype(np.int32)
    return src, dst


def pool_graph_edges(n, pool_idx, win):
    srcs = [np.arange(n)]
    dsts = [np.arange(n)]                       # self loops (in-degree >= 1)
    for c in pool_idx:
        members = (c + np.arange(win)) % n
        srcs.append(members); dsts.append(np.full(win, c))
        srcs.append(np.full(win, c)); dsts.append(members)
    return (np.concatenate(srcs).astype(np.int32),
            np.concatenate(dsts).astype(np.int32))


def dense_mask_i8(src, dst, n):
    m = np.zeros((n, n), np.int8)
    m[dst, src] = 1
    return m


# ---------------------------------------------------------------------------
# UNet forward (depth=1, b_undersample=False path).
# layers: [GMMConv(Cin->2H, bias), MaxPool, GMMConv(2H->4H, no bias),
#          UpSample, GMMConv(6H->Cout, bias)]
# Activations flow padded to 128 channels; padding stripped at the very end.
# ---------------------------------------------------------------------------
def unet_forward(n_feat, params, G):
    n0, n1 = G["n0"], G["n1"]

    # layer 0: GMMConv(in_chan -> 2H, bias) on g[0] with pkor[0], then relu
    w0 = gaussian_edge_weights(G["pkor0"], params["mu0"], params["isig0"])
    A0 = build_dense_A(G["src0"], G["dst0"], w0, n0, n0)
    Wp0 = place_weight(params["W0"], [(0, params["W0"].shape[1])], C_PAD, C_PAD)
    h0 = pad_channels(n_feat, C_PAD)
    out = gmm_conv(h0, Wp0, A0, pad_bias(params["b0"], C_PAD), "relu", True)[:n0]
    skip0 = out                                         # valid channels :2H
    v_skip = params["W0"].shape[2]                      # 2H

    # MaxPool on g_max[0]: graph max then select pooled nodes
    out = graph_max(out, G["mask_max"])[G["pool_idx"]]  # (n1, 128)

    # GMMConv(2H -> 4H, no bias) on g[1] with pkor[1], then relu
    w1 = gaussian_edge_weights(G["pkor1"], params["mu1"], params["isig1"])
    A1 = build_dense_A(G["src1"], G["dst1"], w1, n1, n1)
    Wp1 = place_weight(params["W1"], [(0, params["W1"].shape[1])], C_PAD, C_PAD)
    out = gmm_conv(out, Wp1, A1, pad_bias(params["b1"], C_PAD), "relu", False)[:n1]
    v_up = params["W1"].shape[2]                        # 4H

    # UpSample on g_max[0]: scatter into zeros then graph max
    h_up = jnp.zeros((n0, C_PAD), jnp.float32).at[G["pool_idx"]].set(out)
    out = graph_max(h_up, G["mask_max"])                # (n0, 128) valid :4H

    # final GMMConv((4H + 2H) -> out_chan, bias) on g[0] with cat(out, skip0), tanh
    w2 = gaussian_edge_weights(G["pkor0"], params["mu2"], params["isig2"])
    A2 = build_dense_A(G["src0"], G["dst0"], w2, n0, n0)
    h_cat = jnp.concatenate([out, skip0], axis=1)       # (n0, 256) padded concat
    Wp2 = place_weight(params["W2"], [(0, v_up), (C_PAD, v_skip)], 2 * C_PAD, C_PAD)
    out = gmm_conv(h_cat, Wp2, A2, pad_bias(params["b2"], C_PAD), "tanh", True)[:n0]
    out_chan = params["W2"].shape[2]
    return out[:, :out_chan]


def init_gmm_params(key, c_in, c_out, use_bias):
    k1, k2 = jax.random.split(key)
    std = np.sqrt(2.0 / (c_in + K_KERNELS * c_out))          # xavier-normal on DGL fc
    W = jax.random.normal(k1, (K_KERNELS, c_in, c_out), jnp.float32) * std
    mu = jax.random.normal(k2, (K_KERNELS, P_DIM), jnp.float32) * 0.1
    isig = jnp.ones((K_KERNELS, P_DIM), jnp.float32)
    b = jnp.zeros((c_out,), jnp.float32)                      # zero even if bias unused
    return W, mu, isig, b


if __name__ == "__main__":
    # small synthetic configuration
    in_chan, out_chan, hidden = 2, 40, 20
    n0, n1 = 64, 16                      # fine graph nodes, pooled graph nodes

    # graphs
    src0, dst0 = ring_graph_edges(n0)                             # g[0]
    src1, dst1 = ring_graph_edges(n1)                             # g[1]
    pool_idx = np.arange(0, n0, n0 // n1, dtype=np.int32)         # INDICES[0]
    src_m, dst_m = pool_graph_edges(n0, pool_idx, win=4)          # g_max[0]
    mask_max = dense_mask_i8(src_m, dst_m, n0)

    key = jax.random.PRNGKey(0)
    k_feat, k_p0, k_p1, k_l0, k_l1, k_l2 = jax.random.split(key, 6)

    pkor0 = jax.random.normal(k_p0, (src0.shape[0], P_DIM), jnp.float32) * 0.5
    pkor1 = jax.random.normal(k_p1, (src1.shape[0], P_DIM), jnp.float32) * 0.5

    W0, mu0, isig0, b0 = init_gmm_params(k_l0, in_chan, 2 * hidden, True)
    W1, mu1, isig1, b1 = init_gmm_params(k_l1, 2 * hidden, 4 * hidden, False)
    W2, mu2, isig2, b2 = init_gmm_params(k_l2, (2 + 4) * hidden, out_chan, True)

    params = dict(W0=W0, mu0=mu0, isig0=isig0, b0=b0,
                  W1=W1, mu1=mu1, isig1=isig1, b1=b1,
                  W2=W2, mu2=mu2, isig2=isig2, b2=b2)
    G = dict(src0=jnp.asarray(src0), dst0=jnp.asarray(dst0),
             src1=jnp.asarray(src1), dst1=jnp.asarray(dst1),
             pkor0=pkor0, pkor1=pkor1,
             mask_max=jnp.asarray(mask_max),
             pool_idx=jnp.asarray(pool_idx),
             n0=n0, n1=n1)

    n_feat = jax.random.normal(k_feat, (n0, in_chan), jnp.float32)

    out = unet_forward(n_feat, params, G)
    out = jax.block_until_ready(out)

    assert out.shape == (n0, out_chan), out.shape
    assert bool(jnp.all(jnp.isfinite(out)))
    assert bool(jnp.all(jnp.abs(out) <= 1.0 + 1e-6))   # tanh output range
    print("KERNEL_OK")
</pallas_src>

<mosaic_0001>
module attributes {stable_mosaic.version = 11 : i64} {
  func.func @_proj_kernel(%arg0: i32, %arg1: memref<128x128xbf16, #tpu.memory_space<vmem>>, %arg2: memref<128x128xbf16, #tpu.memory_space<vmem>>, %arg3: memref<128x128xbf16, #tpu.memory_space<vmem>>) attributes {dimension_semantics = [#tpu.dimension_semantics<parallel>], iteration_bounds = array<i64: 10>, scalar_prefetch = 0 : i64, scratch_operands = 0 : i64, tpu.core_type = #tpu.core_type<tc>, window_params = [{pipeline_mode = #tpu.pipeline_mode<synchronous>, transform_indices = @transform_0, window_bounds = array<i64: 128, 128>}, {transform_indices = @transform_1, window_bounds = array<i64: 128, 128>}, {transform_indices = @transform_2, window_bounds = array<i64: 128, 128>}]} {
    %c0 = arith.constant 0 : index
    %c0_0 = arith.constant 0 : index
    %0 = vector.load %arg1[%c0, %c0_0] : memref<128x128xbf16, #tpu.memory_space<vmem>>, vector<128x128xbf16>
    %c0_1 = arith.constant 0 : index
    %c0_2 = arith.constant 0 : index
    %1 = vector.load %arg2[%c0_1, %c0_2] : memref<128x128xbf16, #tpu.memory_space<vmem>>, vector<128x128xbf16>
    %cst = arith.constant dense<0.000000e+00> : vector<128x128xf32>
    %2 = tpu.matmul %0, %1, %cst {dimension_numbers = #tpu.dot_dimension_numbers<[1], [0], [0], [1], [0, 0, 1, 1], [], []>} : vector<128x128xbf16>, vector<128x128xbf16>, vector<128x128xf32> -> vector<128x128xf32>
    %3 = arith.truncf %2 : vector<128x128xf32> to vector<128x128xbf16>
    %c0_3 = arith.constant 0 : index
    %c0_4 = arith.constant 0 : index
    %4 = vector.load %arg3[%c0_3, %c0_4] : memref<128x128xbf16, #tpu.memory_space<vmem>>, vector<128x128xbf16>
    tpu.vector_store %arg3[%c0_3, %c0_4], %3 {strides = array<i32>} : memref<128x128xbf16, #tpu.memory_space<vmem>>, vector<128x128xbf16>,
    return
  }
  func.func @transform_0(%arg0: i32) -> (i32, i32) {
    %c0_i32 = arith.constant 0 : i32
    %c0_i32_0 = arith.constant 0 : i32
    %c0_i32_1 = arith.constant 0 : i32
    return %c0_i32, %c0_i32_0 : i32, i32
  }
  func.func @transform_1(%arg0: i32) -> (i32, i32) {
    %c0_i32 = arith.constant 0 : i32
    %c0_i32_0 = arith.constant 0 : i32
    return %c0_i32, %arg0 : i32, i32
  }
  func.func @transform_2(%arg0: i32) -> (i32, i32) {
    %c0_i32 = arith.constant 0 : i32
    %c0_i32_0 = arith.constant 0 : i32
    return %c0_i32, %arg0 : i32, i32
  }
}

</mosaic_0001>

<llo_original>
// kernel: tpu_custom_call.1
$region0: #{tpu_custom_call.1}
  #allocation0 [shape = 'u32[]', space=smem, size = 0x4, offset = 0x4, fixed_abs, tag = 'smem constant byte address 0x4 - core index']
  #allocation1 [shape = 'u32[144,128]{1,0:T(1,128)}', space=vmem, size = 0x12000, scoped, tag = 'internal scratch']
  %s0 = inlined_call_operand.hbm [shape: bf16[128,128], index: 0, kind: input, shape index: {}]
  %s1 = inlined_call_operand.hbm [shape: bf16[128,1280], index: 1, kind: input, shape index: {}]
  %s2 = inlined_call_operand.hbm [shape: bf16[128,1280], index: 2, kind: output, shape index: {}]
  %s3 = sld [smem:[#allocation0]]
  $region49: #{tpu_custom_call.1} parent=0
    _
  %s5 = ssub.s32 1, %s3
  %s6 = scalar_select 0, %s5, %s3
  $region1: #{tpu_custom_call.1} parent=0
    #allocation2 [shape = 'u8[32768]{0}', space=vmem, size = 0x8000, scoped, tag = 'input window, operand 0, single buffered']
    #allocation3 [shape = 's32[2]{0}', space=sflag, size = 0x8, scoped, tag = 'scoped memory for tpu_custom_call.1']
    #allocation4 [shape = 's32[2]{0}', space=sflag, size = 0x8, scoped, tag = 'scoped memory for tpu_custom_call.1']
    #allocation5 [shape = 'u8[65536]{0}', space=vmem, size = 0x10000, scoped, tag = 'input window, operand 1']
    #allocation6 [shape = 's32[2]{0}', space=sflag, size = 0x8, scoped, tag = 'scoped memory for tpu_custom_call.1']
    #allocation7 [shape = 'u8[65536]{0}', space=vmem, size = 0x10000, scoped, tag = 'output window, operand 0']
    %7 = vsyncpa [#allocation3], 0
    %8 = vsyncpa [#allocation6], 0
    %s9 = scalar_lea.sflag [#allocation6], 1
    %10 = vsyncpa %s9, 0
    %11 = vsyncpa [#allocation4], 0
    %s12 = scalar_lea.sflag [#allocation4], 1
    %13 = vsyncpa %s12, 0
    loop: start=0, step=1, limit=12
    $region2: #{tpu_custom_call.1} parent=1 // loop_pre_header
      _
    $region3: #{tpu_custom_call.1} parent=1 // loop_header
      %s15 = sphi 0, %s19
      %p16 = scmp.ge.s32.totalorder %s15, 12
      %s23 = sphi 0, %s23
      %s25 = sphi 0, %s23
      %s26 = sphi 0, %s25
      %s40 = sphi 0, %s26
      %s46 = sphi 0, %s48
      %s49 = sphi 0, %s46
      %s50 = sphi 0, %s49
      %s66 = sphi 0, %s50
      %s72 = sphi 0, %s74
      %s75 = sphi 0, %s72
      %s76 = sphi 0, %s75
      %s92 = sphi 0, %s76
    $region4: #{tpu_custom_call.1} parent=1 // loop_header_branch
      %18 = sbr.rel (%p16) target = $region8
    $region5: #{tpu_custom_call.1} parent=1 // loop_body
      %s20 = ssub.s32 %s15, 1
      %s21 = ssub.s32 %s15, 2
      %s22 = sadd.s32 %s15, 1
      %s24 = sadd.s32 %s23, 1
      %p27 = scmp.eq.s32.totalorder %s15, 9
      %p28 = scmp.ne.s32.totalorder %s23, %s25
      %p29 = scmp.eq.s32.totalorder %s15, 0
      %p30 = por %p28, %p29
      %p31 = scmp.ne.s32.totalorder %s23, %s25
      %p32 = scmp.eq.s32.totalorder %s20, 9
      %p33 = por %p31, %p32
      %p34 = scmp.ne.s32.totalorder %s25, %s26
      %p35 = scmp.eq.s32.totalorder %s20, 0
      %p36 = por %p34, %p35
      %p37 = scmp.ne.s32.totalorder %s25, %s26
      %p38 = scmp.eq.s32.totalorder %s21, 9
      %p39 = por %p37, %p38
      %p41 = scmp.ne.s32.totalorder %s26, %s40
      %p42 = scmp.eq.s32.totalorder %s21, 0
      %p43 = por %p41, %p42
      %s44 = ssub.s32 %s15, %s22
      %p45 = scmp.eq.s32.totalorder %s44, 0
      %s47 = sadd.s32 %s46, 1
      %s48 = scalar_select %p45, %s46, %s47
      %p51 = pneg %p45
      %p52 = scmp.eq.s32.totalorder %s15, 9
      %p53 = por %p51, %p52
      %p54 = scmp.ne.s32.totalorder %s46, %s49
      %p55 = scmp.eq.s32.totalorder %s15, 0
      %p56 = por %p54, %p55
      %p57 = scmp.ne.s32.totalorder %s46, %s49
      %p58 = scmp.eq.s32.totalorder %s20, 9
      %p59 = por %p57, %p58
      %p60 = scmp.ne.s32.totalorder %s49, %s50
      %p61 = scmp.eq.s32.totalorder %s20, 0
      %p62 = por %p60, %p61
      %p63 = scmp.ne.s32.totalorder %s49, %s50
      %p64 = scmp.eq.s32.totalorder %s21, 9
      %p65 = por %p63, %p64
      %p67 = scmp.ne.s32.totalorder %s50, %s66
      %p68 = scmp.eq.s32.totalorder %s21, 0
      %p69 = por %p67, %p68
      %s70 = ssub.s32 %s15, %s22
      %p71 = scmp.eq.s32.totalorder %s70, 0
      %s73 = sadd.s32 %s72, 1
      %s74 = scalar_select %p71, %s72, %s73
      %p77 = pneg %p71
      %p78 = scmp.eq.s32.totalorder %s15, 9
      %p79 = por %p77, %p78
      %p80 = scmp.ne.s32.totalorder %s72, %s75
      %p81 = scmp.eq.s32.totalorder %s15, 0
      %p82 = por %p80, %p81
      %p83 = scmp.ne.s32.totalorder %s72, %s75
      %p84 = scmp.eq.s32.totalorder %s20, 9
      %p85 = por %p83, %p84
      %p86 = scmp.ne.s32.totalorder %s75, %s76
      %p87 = scmp.eq.s32.totalorder %s20, 0
      %p88 = por %p86, %p87
      %p89 = scmp.ne.s32.totalorder %s75, %s76
      %p90 = scmp.eq.s32.totalorder %s21, 9
      %p91 = por %p89, %p90
      %p93 = scmp.ne.s32.totalorder %s76, %s92
      %p94 = scmp.eq.s32.totalorder %s21, 0
      %p95 = por %p93, %p94
      %p96 = scmp.le.s32.totalorder 1, %s15
      %p97 = scmp.lt.s32.totalorder %s15, 11
      %p98 = pnand %p96, %p97
      %p99 = pneg %p98
      // Predicated region
      $region9: #{tpu_custom_call.1} parent=5 // pred_check
        _
      $region10: #{tpu_custom_call.1} parent=5 // pred_check_branch
        %101 = sbr.rel (%p98) target = $region12
      $region11: #{tpu_custom_call.1} parent=5 // pred_region
        %s102 = ssub.s32 %s15, 1
        // Predicated region
        $region13: #{tpu_custom_call.1} parent=11 // pred_check
          %p103 = pneg %p36
        $region14: #{tpu_custom_call.1} parent=11 // pred_check_branch
          %105 = sbr.rel (%p103) target = $region16
        $region15: #{tpu_custom_call.1} parent=11 // pred_region
          %s107 = ssub.s32 1024, 1024
          %108 = vsyncadd [#allocation3], %s107
          %s109 = sshll.u32 [#allocation2], 4
          %s110 = int_to_ptr.vmem [resolvable:$true] %s109
          %115 = dma.hbm_to_vmem [thread:$0]  %s0, 1024, %s110, [#allocation3], 64, 64, 4
        $region16: #{tpu_custom_call.1} parent=11 // pred_fallthru
          _
      $region12: #{tpu_custom_call.1} parent=5 // pred_fallthru
        _
      %p116 = scmp.lt.s32.totalorder %s15, 10
      // Predicated region
      $region17: #{tpu_custom_call.1} parent=5 // pred_check
        %p117 = pneg %p116
      $region18: #{tpu_custom_call.1} parent=5 // pred_check_branch
        %119 = sbr.rel (%p117) target = $region20
      $region19: #{tpu_custom_call.1} parent=5 // pred_region
        // Predicated region
        $region21: #{tpu_custom_call.1} parent=19 // pred_check
          %p120 = pneg %p56
        $region22: #{tpu_custom_call.1} parent=19 // pred_check_branch
          %122 = sbr.rel (%p120) target = $region24
        $region23: #{tpu_custom_call.1} parent=19 // pred_region
          %s123 = sand.u32 %s46, 1
          %s124 = scalar_lea.sflag [#allocation6], %s123
          %s125 = sand.u32 %s46, 1
          %s126 = smul.addr %s125, 64
          %s127 = scalar_lea.vmem [#allocation5], %s126
          %s129 = ssub.s32 1024, 1024
          %130 = vsyncadd %s124, %s129
          %s131 = smul.addr %s15, 64
          %s132 = scalar_lea.hbm %s1, %s131
          %s133 = sshll.u32 %s127, 4
          %s134 = int_to_ptr.vmem [resolvable:$true] %s133
          %139 = dma.hbm_to_vmem [thread:$0]  %s132, 1024, %s134, %s124, 640, 64, 4
        $region24: #{tpu_custom_call.1} parent=19 // pred_fallthru
          _
      $region20: #{tpu_custom_call.1} parent=5 // pred_fallthru
        _
      %p140 = scmp.le.s32.totalorder 1, %s15
      %p141 = scmp.lt.s32.totalorder %s15, 11
      %p142 = pnand %p140, %p141
      %p143 = pneg %p142
      // Predicated region
      $region25: #{tpu_custom_call.1} parent=5 // pred_check
        _
      $region26: #{tpu_custom_call.1} parent=5 // pred_check_branch
        %145 = sbr.rel (%p142) target = $region28
      $region27: #{tpu_custom_call.1} parent=5 // pred_region
        %s146 = ssub.s32 %s15, 1
        // Predicated region
        $region29: #{tpu_custom_call.1} parent=27 // pred_check
          %p147 = pneg %p36
        $region30: #{tpu_custom_call.1} parent=27 // pred_check_branch
          %149 = sbr.rel (%p147) target = $region32
        $region31: #{tpu_custom_call.1} parent=27 // pred_region
          %150 = dma.done [#allocation3], 1024
        $region32: #{tpu_custom_call.1} parent=27 // pred_fallthru
          _
        %s151 = sand.u32 %s49, 1
        %s152 = scalar_lea.sflag [#allocation6], %s151
        %s153 = sand.u32 %s49, 1
        %s154 = smul.addr %s153, 64
        %s155 = scalar_lea.vmem [#allocation5], %s154
        // Predicated region
        $region33: #{tpu_custom_call.1} parent=27 // pred_check
          %p156 = pneg %p62
        $region34: #{tpu_custom_call.1} parent=27 // pred_check_branch
          %158 = sbr.rel (%p156) target = $region36
        $region35: #{tpu_custom_call.1} parent=27 // pred_region
          %159 = dma.done %s152, 1024
        $region36: #{tpu_custom_call.1} parent=27 // pred_fallthru
          _
        %p160 = pneg %p36
        %p161 = pneg %p33
        %s162 = sand.u32 %s49, 1
        %s163 = scalar_lea.sflag [#allocation6], %s162
        %s164 = sand.u32 %s49, 1
        %s165 = smul.addr %s164, 64
        %s166 = scalar_lea.vmem [#allocation5], %s165
        %p167 = pneg %p62
        %p168 = pneg %p59
        %p169 = pneg %p88
        %p170 = pneg %p85
        %s171 = sand.u32 %s75, 1
        %s172 = scalar_lea.sflag [#allocation4], %s171
        %s173 = sand.u32 %s75, 1
        %s174 = smul.addr %s173, 64
        %s175 = scalar_lea.vmem [#allocation7], %s174
        %v177 = vld [vmem:[#allocation2] sm:$0xf]
        %v178 = vld [vmem:[#allocation2 + $0x4] sm:$0xf]
        %v179 = vld [vmem:[#allocation2 + $0x8] sm:$0xf]
        %v180 = vld [vmem:[#allocation2 + $0xc] sm:$0xf]
        %v181 = vld [vmem:[#allocation2 + $0x10] sm:$0xf]
        %v182 = vld [vmem:[#allocation2 + $0x14] sm:$0xf]
        %v183 = vld [vmem:[#allocation2 + $0x18] sm:$0xf]
        %v184 = vld [vmem:[#allocation2 + $0x1c] sm:$0xf]
        %v185 = vld [vmem:[#allocation2 + $0x20] sm:$0xf]
        %v186 = vld [vmem:[#allocation2 + $0x24] sm:$0xf]
        %v187 = vld [vmem:[#allocation2 + $0x28] sm:$0xf]
        %v188 = vld [vmem:[#allocation2 + $0x2c] sm:$0xf]
        %v189 = vld [vmem:[#allocation2 + $0x30] sm:$0xf]
        %v190 = vld [vmem:[#allocation2 + $0x34] sm:$0xf]
        %v191 = vld [vmem:[#allocation2 + $0x38] sm:$0xf]
        %v192 = vld [vmem:[#allocation2 + $0x3c] sm:$0xf]
        %v193 = vld [vmem:[%s155] sm:$0xf]
        %v194 = vld [vmem:[%s155 + $0x4] sm:$0xf]
        %v195 = vld [vmem:[%s155 + $0x8] sm:$0xf]
        %v196 = vld [vmem:[%s155 + $0xc] sm:$0xf]
        %v197 = vld [vmem:[%s155 + $0x10] sm:$0xf]
        %v198 = vld [vmem:[%s155 + $0x14] sm:$0xf]
        %v199 = vld [vmem:[%s155 + $0x18] sm:$0xf]
        %v200 = vld [vmem:[%s155 + $0x1c] sm:$0xf]
        %v201 = vld [vmem:[%s155 + $0x20] sm:$0xf]
        %v202 = vld [vmem:[%s155 + $0x24] sm:$0xf]
        %v203 = vld [vmem:[%s155 + $0x28] sm:$0xf]
        %v204 = vld [vmem:[%s155 + $0x2c] sm:$0xf]
        %v205 = vld [vmem:[%s155 + $0x30] sm:$0xf]
        %v206 = vld [vmem:[%s155 + $0x34] sm:$0xf]
        %v207 = vld [vmem:[%s155 + $0x38] sm:$0xf]
        %v208 = vld [vmem:[%s155 + $0x3c] sm:$0xf]
        %v225 = vunpack.c.l.b16 %v177
        %v226 = vunpack.c.l.b16 %v178
        %v227 = vunpack.c.l.b16 %v179
        %v228 = vunpack.c.l.b16 %v180
        %v229 = vunpack.c.l.b16 %v181
        %v230 = vunpack.c.l.b16 %v182
        %v231 = vunpack.c.l.b16 %v183
        %v232 = vunpack.c.l.b16 %v184
        %v233 = vunpack.c.l.b16 %v185
        %v234 = vunpack.c.l.b16 %v186
        %v235 = vunpack.c.l.b16 %v187
        %v236 = vunpack.c.l.b16 %v188
        %v237 = vunpack.c.l.b16 %v189
        %v238 = vunpack.c.l.b16 %v190
        %v239 = vunpack.c.l.b16 %v191
        %v240 = vunpack.c.l.b16 %v192
        %v241 = vpack.c.b16 %v226, %v225
        %v242 = vpack.c.b16 %v228, %v227
        %v243 = vpack.c.b16 %v230, %v229
        %v244 = vpack.c.b16 %v232, %v231
        %v245 = vpack.c.b16 %v234, %v233
        %v246 = vpack.c.b16 %v236, %v235
        %v247 = vpack.c.b16 %v238, %v237
        %v248 = vpack.c.b16 %v240, %v239
        %v273 = vunpack.c.l.b16 %v193
        %v274 = vunpack.c.l.b16 %v194
        %v275 = vunpack.c.l.b16 %v195
        %v276 = vunpack.c.l.b16 %v196
        %v277 = vunpack.c.l.b16 %v197
        %v278 = vunpack.c.l.b16 %v198
        %v279 = vunpack.c.l.b16 %v199
        %v280 = vunpack.c.l.b16 %v200
        %v281 = vunpack.c.l.b16 %v201
        %v282 = vunpack.c.l.b16 %v202
        %v283 = vunpack.c.l.b16 %v203
        %v284 = vunpack.c.l.b16 %v204
        %v285 = vunpack.c.l.b16 %v205
        %v286 = vunpack.c.l.b16 %v206
        %v287 = vunpack.c.l.b16 %v207
        %v288 = vunpack.c.l.b16 %v208
        %v289 = vpack.c.b16 %v274, %v273
        %v290 = vpack.c.b16 %v276, %v275
        %v291 = vpack.c.b16 %v278, %v277
        %v292 = vpack.c.b16 %v280, %v279
        %v293 = vpack.c.b16 %v282, %v281
        %v294 = vpack.c.b16 %v284, %v283
        %v295 = vpack.c.b16 %v286, %v285
        %v296 = vpack.c.b16 %v288, %v287
        %305 = vmatprep.subr.bf16.mxu0 0
        %306 = vmatpush1.bf16.msra.mxu0 %v289
        %307 = vmatprep.subr.bf16.mxu0 0
        %308 = vmatpush1.bf16.msra.mxu0 %v290
        %309 = vmatprep.subr.bf16.mxu0 0
        %310 = vmatpush1.bf16.msra.mxu0 %v291
        %311 = vmatprep.subr.bf16.mxu0 0
        %312 = vmatpush1.bf16.msra.mxu0 %v292
        %313 = vmatprep.subr.bf16.mxu0 0
        %314 = vmatpush1.bf16.msra.mxu0 %v293
        %315 = vmatprep.subr.bf16.mxu0 0
        %316 = vmatpush1.bf16.msra.mxu0 %v294
        %317 = vmatprep.subr.bf16.mxu0 0
        %318 = vmatpush1.bf16.msra.mxu0 %v295
        %319 = vmatprep.subr.bf16.mxu0 0
        %320 = vmatpush1.bf16.msra.mxu0 %v296
        %321 = vmatprep.subr.bf16.mxu0 0
        %322 = vmatpush1.bf16.msra.mxu0 0
        %323 = vmatprep.subr.bf16.mxu0 0
        %324 = vmatpush1.bf16.msra.mxu0 0
        %325 = vmatprep.subr.bf16.mxu0 0
        %326 = vmatpush1.bf16.msra.mxu0 0
        %327 = vmatprep.subr.bf16.mxu0 0
        %328 = vmatpush1.bf16.msra.mxu0 0
        %329 = vmatprep.subr.bf16.mxu0 0
        %330 = vmatpush1.bf16.msra.mxu0 0
        %331 = vmatprep.subr.bf16.mxu0 0
        %332 = vmatpush1.bf16.msra.mxu0 0
        %333 = vmatprep.subr.bf16.mxu0 0
        %334 = vmatpush1.bf16.msra.mxu0 0
        %335 = vmatprep.subr.bf16.mxu0 0
        %336 = vmatpush1.bf16.msra.mxu0 0
        %337 = vmatprep.mubr.bf16.mxu0 0
        %338 = vmatmul.mubr.bf16.gmra.mrb[0].mxu0 %v241
        %v339 = vpop.f32.mrb[0].mxu0
        %v340 = vadd.f32 0.0, %v339
        %v341 = vpop.f32.mrb[0].mxu0
        %v342 = vpop.f32.mrb[0].mxu0
        %v343 = vadd.f32 0.0, %v342
        %v344 = vpop.f32.mrb[0].mxu0
        %345 = vmatprep.mubr.bf16.mxu0 0
        %346 = vmatmul.mubr.bf16.gmra.mrb[0].mxu0 %v242
        %v347 = vpop.f32.mrb[0].mxu0
        %v348 = vadd.f32 0.0, %v347
        %v349 = vpop.f32.mrb[0].mxu0
        %v350 = vpop.f32.mrb[0].mxu0
        %v351 = vadd.f32 0.0, %v350
        %v352 = vpop.f32.mrb[0].mxu0
        %353 = vmatprep.mubr.bf16.mxu0 0
        %354 = vmatmul.mubr.bf16.gmra.mrb[0].mxu0 %v243
        %v355 = vpop.f32.mrb[0].mxu0
        %v356 = vadd.f32 0.0, %v355
        %v357 = vpop.f32.mrb[0].mxu0
        %v358 = vpop.f32.mrb[0].mxu0
        %v359 = vadd.f32 0.0, %v358
        %v360 = vpop.f32.mrb[0].mxu0
        %361 = vmatprep.mubr.bf16.mxu0 0
        %362 = vmatmul.mubr.bf16.gmra.mrb[0].mxu0 %v244
        %v363 = vpop.f32.mrb[0].mxu0
        %v364 = vadd.f32 0.0, %v363
        %v365 = vpop.f32.mrb[0].mxu0
        %v366 = vpop.f32.mrb[0].mxu0
        %v367 = vadd.f32 0.0, %v366
        %v368 = vpop.f32.mrb[0].mxu0
        %369 = vmatprep.mubr.bf16.mxu0 0
        %370 = vmatmul.mubr.bf16.gmra.mrb[0].mxu0 %v245
        %v371 = vpop.f32.mrb[0].mxu0
        %v372 = vadd.f32 0.0, %v371
        %v373 = vpop.f32.mrb[0].mxu0
        %v374 = vpop.f32.mrb[0].mxu0
        %v375 = vadd.f32 0.0, %v374
        %v376 = vpop.f32.mrb[0].mxu0
        %377 = vmatprep.mubr.bf16.mxu0 0
        %378 = vmatmul.mubr.bf16.gmra.mrb[0].mxu0 %v246
        %v379 = vpop.f32.mrb[0].mxu0
        %v380 = vadd.f32 0.0, %v379
        %v381 = vpop.f32.mrb[0].mxu0
        %v382 = vpop.f32.mrb[0].mxu0
        %v383 = vadd.f32 0.0, %v382
        %v384 = vpop.f32.mrb[0].mxu0
        %385 = vmatprep.mubr.bf16.mxu0 0
        %386 = vmatmul.mubr.bf16.gmra.mrb[0].mxu0 %v247
        %v387 = vpop.f32.mrb[0].mxu0
        %v388 = vadd.f32 0.0, %v387
        %v389 = vpop.f32.mrb[0].mxu0
        %v390 = vpop.f32.mrb[0].mxu0
        %v391 = vadd.f32 0.0, %v390
        %v392 = vpop.f32.mrb[0].mxu0
        %393 = vmatprep.mubr.bf16.mxu0 0
        %394 = vmatmul.mubr.bf16.gmra.mrb[0].mxu0 %v248
        %v395 = vpop.f32.mrb[0].mxu0
        %v396 = vadd.f32 0.0, %v395
        %v397 = vpop.f32.mrb[0].mxu0
        %v398 = vpop.f32.mrb[0].mxu0
        %v399 = vadd.f32 0.0, %v398
        %v400 = vpop.f32.mrb[0].mxu0
        %401 = vdwg.mxu0
        %v402 = vpack.c.bf16 %v343, %v340
        %v403 = vpack.c.bf16 %v351, %v348
        %v404 = vpack.c.bf16 %v359, %v356
        %v405 = vpack.c.bf16 %v367, %v364
        %v406 = vpack.c.bf16 %v375, %v372
        %v407 = vpack.c.bf16 %v383, %v380
        %v408 = vpack.c.bf16 %v391, %v388
        %v409 = vpack.c.bf16 %v399, %v396
        %v418 = vunpack.c.l.b16 %v402
        %v419 = vunpack.c.h.b16 %v402
        %v420 = vunpack.c.l.b16 %v403
        %v421 = vunpack.c.h.b16 %v403
        %v422 = vunpack.c.l.b16 %v404
        %v423 = vunpack.c.h.b16 %v404
        %v424 = vunpack.c.l.b16 %v405
        %v425 = vunpack.c.h.b16 %v405
        %v426 = vunpack.c.l.b16 %v406
        %v427 = vunpack.c.h.b16 %v406
        %v428 = vunpack.c.l.b16 %v407
        %v429 = vunpack.c.h.b16 %v407
        %v430 = vunpack.c.l.b16 %v408
        %v431 = vunpack.c.h.b16 %v408
        %v432 = vunpack.c.l.b16 %v409
        %v433 = vunpack.c.h.b16 %v409
        %v434 = vpack.c.b16 %v418, %v418
        %v435 = vpack.c.b16 %v419, %v419
        %v436 = vpack.c.b16 %v420, %v420
        %v437 = vpack.c.b16 %v421, %v421
        %v438 = vpack.c.b16 %v422, %v422
        %v439 = vpack.c.b16 %v423, %v423
        %v440 = vpack.c.b16 %v424, %v424
        %v441 = vpack.c.b16 %v425, %v425
        %v442 = vpack.c.b16 %v426, %v426
        %v443 = vpack.c.b16 %v427, %v427
        %v444 = vpack.c.b16 %v428, %v428
        %v445 = vpack.c.b16 %v429, %v429
        %v446 = vpack.c.b16 %v430, %v430
        %v447 = vpack.c.b16 %v431, %v431
        %v448 = vpack.c.b16 %v432, %v432
        %v449 = vpack.c.b16 %v433, %v433
        %466 = vst [vmem:[%s175] sm:$0xf] %v434
        %467 = vst [vmem:[%s175 + $0x4] sm:$0xf] %v435
        %468 = vst [vmem:[%s175 + $0x8] sm:$0xf] %v436
        %469 = vst [vmem:[%s175 + $0xc] sm:$0xf] %v437
        %470 = vst [vmem:[%s175 + $0x10] sm:$0xf] %v438
        %471 = vst [vmem:[%s175 + $0x14] sm:$0xf] %v439
        %472 = vst [vmem:[%s175 + $0x18] sm:$0xf] %v440
        %473 = vst [vmem:[%s175 + $0x1c] sm:$0xf] %v441
        %474 = vst [vmem:[%s175 + $0x20] sm:$0xf] %v442
        %475 = vst [vmem:[%s175 + $0x24] sm:$0xf] %v443
        %476 = vst [vmem:[%s175 + $0x28] sm:$0xf] %v444
        %477 = vst [vmem:[%s175 + $0x2c] sm:$0xf] %v445
        %478 = vst [vmem:[%s175 + $0x30] sm:$0xf] %v446
        %479 = vst [vmem:[%s175 + $0x34] sm:$0xf] %v447
        %480 = vst [vmem:[%s175 + $0x38] sm:$0xf] %v448
        %481 = vst [vmem:[%s175 + $0x3c] sm:$0xf] %v449
        %s482 = sand.u32 %s75, 1
        %s483 = scalar_lea.sflag [#allocation4], %s482
        %s484 = sand.u32 %s75, 1
        %s485 = smul.addr %s484, 64
        %s486 = scalar_lea.vmem [#allocation7], %s485
        // Predicated region
        $region37: #{tpu_custom_call.1} parent=27 // pred_check
          %p487 = pneg %p85
        $region38: #{tpu_custom_call.1} parent=27 // pred_check_branch
          %489 = sbr.rel (%p487) target = $region40
        $region39: #{tpu_custom_call.1} parent=27 // pred_region
          %s491 = ssub.s32 1024, 1024
          %492 = vsyncadd %s483, %s491
          %s493 = smul.addr %s20, 64
          %s494 = scalar_lea.hbm %s2, %s493
          %s495 = sshll.u32 %s486, 4
          %s496 = int_to_ptr.vmem [resolvable:$true] %s495
          %501 = dma.vmem_to_hbm [thread:$0]  %s496, 1024, %s494, %s483, 64, 640, 4
        $region40: #{tpu_custom_call.1} parent=27 // pred_fallthru
          _
      $region28: #{tpu_custom_call.1} parent=5 // pred_fallthru
        _
      %p502 = scmp.le.s32.totalorder 2, %s15
      // Predicated region
      $region41: #{tpu_custom_call.1} parent=5 // pred_check
        %p503 = pneg %p502
      $region42: #{tpu_custom_call.1} parent=5 // pred_check_branch
        %505 = sbr.rel (%p503) target = $region44
      $region43: #{tpu_custom_call.1} parent=5 // pred_region
        %s506 = ssub.s32 %s15, 2
        // Predicated region
        $region45: #{tpu_custom_call.1} parent=43 // pred_check
          %p507 = pneg %p91
        $region46: #{tpu_custom_call.1} parent=43 // pred_check_branch
          %509 = sbr.rel (%p507) target = $region48
        $region47: #{tpu_custom_call.1} parent=43 // pred_region
          %s510 = sand.u32 %s76, 1
          %s511 = scalar_lea.sflag [#allocation4], %s510
          %s512 = sand.u32 %s76, 1
          %s513 = smul.addr %s512, 64
          %s514 = scalar_lea.vmem [#allocation7], %s513
          %515 = dma.done %s511, 1024
        $region48: #{tpu_custom_call.1} parent=43 // pred_fallthru
          _
      $region44: #{tpu_custom_call.1} parent=5 // pred_fallthru
        _
    $region6: #{tpu_custom_call.1} parent=1 // loop_footer
      %s19 = sadd.s32 1, %s15
    $region7: #{tpu_custom_call.1} parent=1 // loop_footer_branch
      %14 = sbr.rel target = $region3
    $region8: #{tpu_custom_call.1} parent=1 // loop_exit
      _
    %516 = vsyncpa [#allocation3], 1
    %s517 = scalar_lea.sflag [#allocation3], 1
    %518 = vsyncpa %s517, 1
    %519 = vsyncpa [#allocation6], 1
    %s520 = scalar_lea.sflag [#allocation6], 1
    %521 = vsyncpa %s520, 1
    %522 = vsyncpa [#allocation4], 1
    %s523 = scalar_lea.sflag [#allocation4], 1
    %524 = vsyncpa %s523, 1

</llo_original>
